<compile_context>
chip_gen: v5e
topology: v5e:2x2
jax: 0.10.0
libtpu: 0.0.40
codegen_flags: <defaults>
</compile_context>

<pallas_src>
import functools

import jax
import jax.numpy as jnp
from jax.experimental import pallas as pl
from jax.experimental.pallas import tpu as pltpu

LANE = 128


def _round_up(n, m):
    return ((n + m - 1) // m) * m


def _dnn_mlp_kernel(x_ref, w1_ref, b1_ref, w2_ref, b2_ref, w3_ref, b3_ref, o_ref):
    """One batch tile of the fused MLP. All feature dims are 128-lane padded.

    Dots accumulate in f32 on the MXU; bias add + tanh run in f32 on VPU/EUP
    (keeps v5e happy: no bf16 elementwise), then cast back to the weight dtype
    for the next matmul.
    """
    x = x_ref[...]

    h1 = jnp.dot(x, w1_ref[...], preferred_element_type=jnp.float32) + b1_ref[...]
    h1 = jnp.tanh(h1).astype(w2_ref.dtype)

    h2 = jnp.dot(h1, w2_ref[...], preferred_element_type=jnp.float32) + b2_ref[...]
    h2 = jnp.tanh(h2).astype(w3_ref.dtype)

    out = jnp.dot(h2, w3_ref[...], preferred_element_type=jnp.float32) + b3_ref[...]
    o_ref[...] = out.astype(o_ref.dtype)
    # NOTE: bias-folding into the matmul (ones column trick) skipped on purpose —
    # the kernel is memory/launch bound at these sizes, not VALU bound.


@functools.partial(jax.jit, static_argnames=("batch_tile", "compute_dtype"))
def dnn_forward(x, w1, b1, w2, b2, w3, b3, *, batch_tile=256,
                compute_dtype=jnp.float32):
    """Pallas wrapper: lane-pads all feature dims to 128, tiles the batch dim,
    keeps weights VMEM-resident across grid steps, returns [B, out_dim] f32."""
    B, in_dim = x.shape
    h1_dim = w1.shape[1]
    h2_dim = w2.shape[1]
    out_dim = w3.shape[1]

    # --- lane padding (exact: zero pads contribute nothing) ---
    in_p = _round_up(in_dim, LANE)
    h1_p = _round_up(h1_dim, LANE)
    h2_p = _round_up(h2_dim, LANE)
    out_p = _round_up(out_dim, LANE)

    # --- batch tiling ---
    tb = min(batch_tile, _round_up(B, 8))
    tb = _round_up(tb, 8)
    b_p = _round_up(B, tb)
    grid = (b_p // tb,)

    cd = jnp.dtype(compute_dtype)
    xp = jnp.zeros((b_p, in_p), cd).at[:B, :in_dim].set(x.astype(cd))
    w1p = jnp.zeros((in_p, h1_p), cd).at[:in_dim, :h1_dim].set(w1.astype(cd))
    w2p = jnp.zeros((h1_p, h2_p), cd).at[:h1_dim, :h2_dim].set(w2.astype(cd))
    w3p = jnp.zeros((h2_p, out_p), cd).at[:h2_dim, :out_dim].set(w3.astype(cd))
    # biases stay f32 (added after the f32 accumulation)
    b1p = jnp.zeros((1, h1_p), jnp.float32).at[:, :h1_dim].set(
        b1.reshape(1, -1).astype(jnp.float32))
    b2p = jnp.zeros((1, h2_p), jnp.float32).at[:, :h2_dim].set(
        b2.reshape(1, -1).astype(jnp.float32))
    b3p = jnp.zeros((1, out_p), jnp.float32).at[:, :out_dim].set(
        b3.reshape(1, -1).astype(jnp.float32))

    # --- block specs: x/out walk the batch grid, weights/biases are resident ---
    x_spec = pl.BlockSpec((tb, in_p), lambda i: (i, 0))
    o_spec = pl.BlockSpec((tb, out_p), lambda i: (i, 0))
    const = lambda a: pl.BlockSpec(a.shape, lambda i: (0,) * a.ndim)

    itemsize = cd.itemsize
    weight_bytes = (w1p.size + w2p.size + w3p.size) * itemsize \
                 + (b1p.size + b2p.size + b3p.size) * 4
    cost = pl.CostEstimate(
        flops=2 * b_p * (in_p * h1_p + h1_p * h2_p + h2_p * out_p),
        transcendentals=b_p * (h1_p + h2_p),
        bytes_accessed=b_p * in_p * itemsize + b_p * out_p * 4 + weight_bytes,
    )

    out_padded = pl.pallas_call(
        _dnn_mlp_kernel,
        out_shape=jax.ShapeDtypeStruct((b_p, out_p), jnp.float32),
        grid=grid,
        in_specs=[x_spec, const(w1p), const(b1p), const(w2p), const(b2p),
                  const(w3p), const(b3p)],
        out_specs=o_spec,
        compiler_params=pltpu.CompilerParams(
            dimension_semantics=("parallel",),  # v7x: both TCs split the batch
        ),
        cost_estimate=cost,
    )(xp, w1p, b1p, w2p, b2p, w3p, b3p)

    return out_padded[:B, :out_dim]


def init_params(key, input_dim, hidden_dim1, hidden_dim2, out_dim=2):
    """Deterministic init mimicking nn.Linear's uniform(-1/sqrt(fan_in), ...).
    Weights stored [in, out]; biases as [1, out]."""
    keys = jax.random.split(key, 6)

    def linear(kw, kb, fan_in, fan_out):
        bound = 1.0 / jnp.sqrt(jnp.float32(fan_in))
        w = jax.random.uniform(kw, (fan_in, fan_out), jnp.float32, -bound, bound)
        b = jax.random.uniform(kb, (1, fan_out), jnp.float32, -bound, bound)
        return w, b

    w1, b1 = linear(keys[0], keys[1], input_dim, hidden_dim1)
    w2, b2 = linear(keys[2], keys[3], hidden_dim1, hidden_dim2)
    w3, b3 = linear(keys[4], keys[5], hidden_dim2, out_dim)
    return w1, b1, w2, b2, w3, b3


def reference_forward(x, w1, b1, w2, b2, w3, b3):
    h1 = jnp.tanh(x @ w1 + b1)
    h2 = jnp.tanh(h1 @ w2 + b2)
    return h2 @ w3 + b3


if __name__ == "__main__":
    # config: user_dim=16, item_dim=16 -> input_dim=32; hidden_dim1=32, hidden_dim2=32
    user_dim, item_dim = 16, 16
    input_dim = user_dim + item_dim
    hidden_dim1, hidden_dim2 = 32, 32

    key = jax.random.PRNGKey(0)
    k_x, k_p, k_big = jax.random.split(key, 3)
    params = init_params(k_p, input_dim, hidden_dim1, hidden_dim2, out_dim=2)

    # --- small batch, f32 (exact match vs reference) ---
    batch = 8
    x = jax.random.normal(k_x, (batch, input_dim), dtype=jnp.float32)
    out = jax.block_until_ready(dnn_forward(x, *params))
    ref = reference_forward(x, *params)
    assert out.shape == (batch, 2), out.shape
    assert jnp.allclose(out, ref, atol=1e-5, rtol=1e-5), "f32 mismatch vs reference"

    # --- large batch, bf16 compute / f32 accumulate (exercises the batch grid) ---
    big_batch = 512
    xb = jax.random.normal(k_big, (big_batch, input_dim), dtype=jnp.float32)
    out_big = jax.block_until_ready(
        dnn_forward(xb, *params, batch_tile=256, compute_dtype=jnp.bfloat16))
    ref_big = reference_forward(xb, *params)
    assert out_big.shape == (big_batch, 2), out_big.shape
    assert jnp.allclose(out_big, ref_big, atol=5e-2, rtol=5e-2), "bf16 mismatch vs reference"

    # TODO(synk): DNN.train (SGD loop) and DNN.predict's softmax are host-side driver
    # code, not part of the forward pass, and are intentionally not ported to Pallas.
    print("KERNEL_OK")
</pallas_src>

<mosaic_0001>
module attributes {stable_mosaic.version = 11 : i64} {
  func.func @_dnn_mlp_kernel(%arg0: i32, %arg1: memref<8x128xf32, #tpu.memory_space<vmem>>, %arg2: memref<128x128xf32, #tpu.memory_space<vmem>>, %arg3: memref<1x128xf32, #tpu.memory_space<vmem>>, %arg4: memref<128x128xf32, #tpu.memory_space<vmem>>, %arg5: memref<1x128xf32, #tpu.memory_space<vmem>>, %arg6: memref<128x128xf32, #tpu.memory_space<vmem>>, %arg7: memref<1x128xf32, #tpu.memory_space<vmem>>, %arg8: memref<8x128xf32, #tpu.memory_space<vmem>>) attributes {dimension_semantics = [#tpu.dimension_semantics<parallel>], iteration_bounds = array<i64: 1>, scalar_prefetch = 0 : i64, scratch_operands = 0 : i64, tpu.core_type = #tpu.core_type<tc>, window_params = [{transform_indices = @transform_0, window_bounds = array<i64: 8, 128>}, {pipeline_mode = #tpu.pipeline_mode<synchronous>, transform_indices = @transform_1, window_bounds = array<i64: 128, 128>}, {pipeline_mode = #tpu.pipeline_mode<synchronous>, transform_indices = @transform_2, window_bounds = array<i64: 1, 128>}, {pipeline_mode = #tpu.pipeline_mode<synchronous>, transform_indices = @transform_3, window_bounds = array<i64: 128, 128>}, {pipeline_mode = #tpu.pipeline_mode<synchronous>, transform_indices = @transform_4, window_bounds = array<i64: 1, 128>}, {pipeline_mode = #tpu.pipeline_mode<synchronous>, transform_indices = @transform_5, window_bounds = array<i64: 128, 128>}, {pipeline_mode = #tpu.pipeline_mode<synchronous>, transform_indices = @transform_6, window_bounds = array<i64: 1, 128>}, {transform_indices = @transform_7, window_bounds = array<i64: 8, 128>}]} {
    %c0 = arith.constant 0 : index
    %c0_0 = arith.constant 0 : index
    %0 = vector.load %arg1[%c0, %c0_0] : memref<8x128xf32, #tpu.memory_space<vmem>>, vector<8x128xf32>
    %c0_1 = arith.constant 0 : index
    %c0_2 = arith.constant 0 : index
    %1 = vector.load %arg2[%c0_1, %c0_2] : memref<128x128xf32, #tpu.memory_space<vmem>>, vector<128x128xf32>
    %cst = arith.constant dense<0.000000e+00> : vector<8x128xf32>
    %2 = tpu.matmul %0, %1, %cst {dimension_numbers = #tpu.dot_dimension_numbers<[1], [0], [0], [1], [0, 0, 1, 1], [], []>} : vector<8x128xf32>, vector<128x128xf32>, vector<8x128xf32> -> vector<8x128xf32>
    %c0_3 = arith.constant 0 : index
    %c0_4 = arith.constant 0 : index
    %3 = vector.load %arg3[%c0_3, %c0_4] : memref<1x128xf32, #tpu.memory_space<vmem>>, vector<1x128xf32>
    %4 = vector.broadcast %3 : vector<1x128xf32> to vector<8x128xf32>
    %5 = arith.addf %2, %4 : vector<8x128xf32>
    %6 = math.tanh %5 : vector<8x128xf32>
    %c0_5 = arith.constant 0 : index
    %c0_6 = arith.constant 0 : index
    %7 = vector.load %arg4[%c0_5, %c0_6] : memref<128x128xf32, #tpu.memory_space<vmem>>, vector<128x128xf32>
    %cst_7 = arith.constant dense<0.000000e+00> : vector<8x128xf32>
    %8 = tpu.matmul %6, %7, %cst_7 {dimension_numbers = #tpu.dot_dimension_numbers<[1], [0], [0], [1], [0, 0, 1, 1], [], []>} : vector<8x128xf32>, vector<128x128xf32>, vector<8x128xf32> -> vector<8x128xf32>
    %c0_8 = arith.constant 0 : index
    %c0_9 = arith.constant 0 : index
    %9 = vector.load %arg5[%c0_8, %c0_9] : memref<1x128xf32, #tpu.memory_space<vmem>>, vector<1x128xf32>
    %10 = vector.broadcast %9 : vector<1x128xf32> to vector<8x128xf32>
    %11 = arith.addf %8, %10 : vector<8x128xf32>
    %12 = math.tanh %11 : vector<8x128xf32>
    %c0_10 = arith.constant 0 : index
    %c0_11 = arith.constant 0 : index
    %13 = vector.load %arg6[%c0_10, %c0_11] : memref<128x128xf32, #tpu.memory_space<vmem>>, vector<128x128xf32>
    %cst_12 = arith.constant dense<0.000000e+00> : vector<8x128xf32>
    %14 = tpu.matmul %12, %13, %cst_12 {dimension_numbers = #tpu.dot_dimension_numbers<[1], [0], [0], [1], [0, 0, 1, 1], [], []>} : vector<8x128xf32>, vector<128x128xf32>, vector<8x128xf32> -> vector<8x128xf32>
    %c0_13 = arith.constant 0 : index
    %c0_14 = arith.constant 0 : index
    %15 = vector.load %arg7[%c0_13, %c0_14] : memref<1x128xf32, #tpu.memory_space<vmem>>, vector<1x128xf32>
    %16 = vector.broadcast %15 : vector<1x128xf32> to vector<8x128xf32>
    %17 = arith.addf %14, %16 : vector<8x128xf32>
    %c0_15 = arith.constant 0 : index
    %c0_16 = arith.constant 0 : index
    %18 = vector.load %arg8[%c0_15, %c0_16] : memref<8x128xf32, #tpu.memory_space<vmem>>, vector<8x128xf32>
    tpu.vector_store %arg8[%c0_15, %c0_16], %17 {strides = array<i32>} : memref<8x128xf32, #tpu.memory_space<vmem>>, vector<8x128xf32>,
    return
  }
  func.func @transform_0(%arg0: i32) -> (i32, i32) {
    %c0_i32 = arith.constant 0 : i32
    %c0_i32_0 = arith.constant 0 : i32
    return %arg0, %c0_i32 : i32, i32
  }
  func.func @transform_1(%arg0: i32) -> (i32, i32) {
    %c0_i32 = arith.constant 0 : i32
    %c0_i32_0 = arith.constant 0 : i32
    %c0_i32_1 = arith.constant 0 : i32
    return %c0_i32, %c0_i32_0 : i32, i32
  }
  func.func @transform_2(%arg0: i32) -> (i32, i32) {
    %c0_i32 = arith.constant 0 : i32
    %c0_i32_0 = arith.constant 0 : i32
    %c0_i32_1 = arith.constant 0 : i32
    return %c0_i32, %c0_i32_0 : i32, i32
  }
  func.func @transform_3(%arg0: i32) -> (i32, i32) {
    %c0_i32 = arith.constant 0 : i32
    %c0_i32_0 = arith.constant 0 : i32
    %c0_i32_1 = arith.constant 0 : i32
    return %c0_i32, %c0_i32_0 : i32, i32
  }
  func.func @transform_4(%arg0: i32) -> (i32, i32) {
    %c0_i32 = arith.constant 0 : i32
    %c0_i32_0 = arith.constant 0 : i32
    %c0_i32_1 = arith.constant 0 : i32
    return %c0_i32, %c0_i32_0 : i32, i32
  }
  func.func @transform_5(%arg0: i32) -> (i32, i32) {
    %c0_i32 = arith.constant 0 : i32
    %c0_i32_0 = arith.constant 0 : i32
    %c0_i32_1 = arith.constant 0 : i32
    return %c0_i32, %c0_i32_0 : i32, i32
  }
  func.func @transform_6(%arg0: i32) -> (i32, i32) {
    %c0_i32 = arith.constant 0 : i32
    %c0_i32_0 = arith.constant 0 : i32
    %c0_i32_1 = arith.constant 0 : i32
    return %c0_i32, %c0_i32_0 : i32, i32
  }
  func.func @transform_7(%arg0: i32) -> (i32, i32) {
    %c0_i32 = arith.constant 0 : i32
    %c0_i32_0 = arith.constant 0 : i32
    return %arg0, %c0_i32 : i32, i32
  }
}

</mosaic_0001>

<llo_original>
// kernel: dnn_forward.1
$region0: #{dnn_forward.1}
  #allocation0 [shape = 'u32[]', space=smem, size = 0x4, offset = 0x4, fixed_abs, tag = 'smem constant byte address 0x4 - core index']
  #allocation1 [shape = 'u32[72,128]{1,0:T(1,128)}', space=vmem, size = 0x9000, scoped, tag = 'internal scratch']
  %s0 = inlined_call_operand.vmem [shape: f32[8,128], index: 0, kind: input, shape index: {}]
  %s1 = inlined_call_operand.vmem [shape: f32[128,128], index: 1, kind: input, shape index: {}]
  %s2 = inlined_call_operand.vmem [shape: f32[1,128], index: 2, kind: input, shape index: {}]
  %s3 = inlined_call_operand.vmem [shape: f32[128,128], index: 3, kind: input, shape index: {}]
  %s4 = inlined_call_operand.vmem [shape: f32[1,128], index: 4, kind: input, shape index: {}]
  %s5 = inlined_call_operand.vmem [shape: f32[128,128], index: 5, kind: input, shape index: {}]
  %s6 = inlined_call_operand.vmem [shape: f32[1,128], index: 6, kind: input, shape index: {}]
  %s7 = inlined_call_operand.vmem [shape: f32[8,128], index: 7, kind: output, shape index: {}]
  %s8 = sld [smem:[#allocation0]]
  $region38: #{dnn_forward.1} parent=0
    _
  %s10 = ssub.s32 1, %s8
  %s11 = scalar_select 0, %s10, %s8
  // Predicated region
  $region2: #{dnn_forward.1} parent=0 // pred_check
    _
  $region3: #{dnn_forward.1} parent=0 // pred_check_branch
    %13 = sbr.rel (0) target = $region5
  $region4: #{dnn_forward.1} parent=0 // pred_region
    _
  $region5: #{dnn_forward.1} parent=0 // pred_fallthru
    _
  // Predicated region
  $region6: #{dnn_forward.1} parent=0 // pred_check
    _
  $region7: #{dnn_forward.1} parent=0 // pred_check_branch
    %15 = sbr.rel (0) target = $region9
  $region8: #{dnn_forward.1} parent=0 // pred_region
    _
  $region9: #{dnn_forward.1} parent=0 // pred_fallthru
    _
  // Predicated region
  $region10: #{dnn_forward.1} parent=0 // pred_check
    _
  $region11: #{dnn_forward.1} parent=0 // pred_check_branch
    %17 = sbr.rel (0) target = $region13
  $region12: #{dnn_forward.1} parent=0 // pred_region
    _
  $region13: #{dnn_forward.1} parent=0 // pred_fallthru
    _
  // Predicated region
  $region14: #{dnn_forward.1} parent=0 // pred_check
    _
  $region15: #{dnn_forward.1} parent=0 // pred_check_branch
    %19 = sbr.rel (0) target = $region17
  $region16: #{dnn_forward.1} parent=0 // pred_region
    _
  $region17: #{dnn_forward.1} parent=0 // pred_fallthru
    _
  // Predicated region
  $region18: #{dnn_forward.1} parent=0 // pred_check
    _
  $region19: #{dnn_forward.1} parent=0 // pred_check_branch
    %21 = sbr.rel (0) target = $region21
  $region20: #{dnn_forward.1} parent=0 // pred_region
    _
  $region21: #{dnn_forward.1} parent=0 // pred_fallthru
    _
  // Predicated region
  $region22: #{dnn_forward.1} parent=0 // pred_check
    _
  $region23: #{dnn_forward.1} parent=0 // pred_check_branch
    %23 = sbr.rel (0) target = $region25
  $region24: #{dnn_forward.1} parent=0 // pred_region
    _
  $region25: #{dnn_forward.1} parent=0 // pred_fallthru
    _
  // Predicated region
  $region26: #{dnn_forward.1} parent=0 // pred_check
    _
  $region27: #{dnn_forward.1} parent=0 // pred_check_branch
    %25 = sbr.rel (0) target = $region29
  $region28: #{dnn_forward.1} parent=0 // pred_region
    _
  $region29: #{dnn_forward.1} parent=0 // pred_fallthru
    _
  %v26 = vld [vmem:[%s0] sm:$0xff]
  %v27 = vld [vmem:[%s1] sm:$0xff]
  %v28 = vld [vmem:[%s1 + $0x8] sm:$0xff]
  %v29 = vld [vmem:[%s1 + $0x10] sm:$0xff]
  %v30 = vld [vmem:[%s1 + $0x18] sm:$0xff]
  %v31 = vld [vmem:[%s1 + $0x20] sm:$0xff]
  %v32 = vld [vmem:[%s1 + $0x28] sm:$0xff]
  %v33 = vld [vmem:[%s1 + $0x30] sm:$0xff]
  %v34 = vld [vmem:[%s1 + $0x38] sm:$0xff]
  %v35 = vld [vmem:[%s1 + $0x40] sm:$0xff]
  %v36 = vld [vmem:[%s1 + $0x48] sm:$0xff]
  %v37 = vld [vmem:[%s1 + $0x50] sm:$0xff]
  %v38 = vld [vmem:[%s1 + $0x58] sm:$0xff]
  %v39 = vld [vmem:[%s1 + $0x60] sm:$0xff]
  %v40 = vld [vmem:[%s1 + $0x68] sm:$0xff]
  %v41 = vld [vmem:[%s1 + $0x70] sm:$0xff]
  %v42 = vld [vmem:[%s1 + $0x78] sm:$0xff]
  %v43 = vld [vmem:[%s2] sm:$0x1]
  %v45 = vperm.slane %v43, 0
  %47 = vmatpush.msra.mxu0 %v42
  %48 = vmatpush.msra.mxu0 %v41
  %49 = vmatpush.msra.mxu0 %v40
  %50 = vmatpush.msra.mxu0 %v39
  %51 = vmatpush.msra.mxu0 %v38
  %52 = vmatpush.msra.mxu0 %v37
  %53 = vmatpush.msra.mxu0 %v36
  %54 = vmatpush.msra.mxu0 %v35
  %55 = vmatpush.msra.mxu0 %v34
  %56 = vmatpush.msra.mxu0 %v33
  %57 = vmatpush.msra.mxu0 %v32
  %58 = vmatpush.msra.mxu0 %v31
  %59 = vmatpush.msra.mxu0 %v30
  %60 = vmatpush.msra.mxu0 %v29
  %61 = vmatpush.msra.mxu0 %v28
  %62 = vmatpush.msra.mxu0 %v27
  %63 = vmatmul.f32.gmra.mxu0 %v26
  %v64 = vpop.f32.mrf.mxu0
  %v65 = vadd.f32 %v45, %v64
  %66 = vdwg.mxu0
  %v67 = vtanh.pop %v65
  %v68 = vld [vmem:[%s3] sm:$0xff]
  %v69 = vld [vmem:[%s3 + $0x8] sm:$0xff]
  %v70 = vld [vmem:[%s3 + $0x10] sm:$0xff]
  %v71 = vld [vmem:[%s3 + $0x18] sm:$0xff]
  %v72 = vld [vmem:[%s3 + $0x20] sm:$0xff]
  %v73 = vld [vmem:[%s3 + $0x28] sm:$0xff]
  %v74 = vld [vmem:[%s3 + $0x30] sm:$0xff]
  %v75 = vld [vmem:[%s3 + $0x38] sm:$0xff]
  %v76 = vld [vmem:[%s3 + $0x40] sm:$0xff]
  %v77 = vld [vmem:[%s3 + $0x48] sm:$0xff]
  %v78 = vld [vmem:[%s3 + $0x50] sm:$0xff]
  %v79 = vld [vmem:[%s3 + $0x58] sm:$0xff]
  %v80 = vld [vmem:[%s3 + $0x60] sm:$0xff]
  %v81 = vld [vmem:[%s3 + $0x68] sm:$0xff]
  %v82 = vld [vmem:[%s3 + $0x70] sm:$0xff]
  %v83 = vld [vmem:[%s3 + $0x78] sm:$0xff]
  %v84 = vld [vmem:[%s4] sm:$0x1]
  %v86 = vperm.slane %v84, 0
  %88 = vmatpush.msra.mxu0 %v83
  %89 = vmatpush.msra.mxu0 %v82
  %90 = vmatpush.msra.mxu0 %v81
  %91 = vmatpush.msra.mxu0 %v80
  %92 = vmatpush.msra.mxu0 %v79
  %93 = vmatpush.msra.mxu0 %v78
  %94 = vmatpush.msra.mxu0 %v77
  %95 = vmatpush.msra.mxu0 %v76
  %96 = vmatpush.msra.mxu0 %v75
  %97 = vmatpush.msra.mxu0 %v74
  %98 = vmatpush.msra.mxu0 %v73
  %99 = vmatpush.msra.mxu0 %v72
  %100 = vmatpush.msra.mxu0 %v71
  %101 = vmatpush.msra.mxu0 %v70
  %102 = vmatpush.msra.mxu0 %v69
  %103 = vmatpush.msra.mxu0 %v68
  %104 = vmatmul.f32.gmra.mxu0 %v67
  %v105 = vpop.f32.mrf.mxu0
  %v106 = vadd.f32 %v86, %v105
  %107 = vdwg.mxu0
  %v108 = vtanh.pop %v106
  %v109 = vld [vmem:[%s5] sm:$0xff]
  %v110 = vld [vmem:[%s5 + $0x8] sm:$0xff]
  %v111 = vld [vmem:[%s5 + $0x10] sm:$0xff]
  %v112 = vld [vmem:[%s5 + $0x18] sm:$0xff]
  %v113 = vld [vmem:[%s5 + $0x20] sm:$0xff]
  %v114 = vld [vmem:[%s5 + $0x28] sm:$0xff]
  %v115 = vld [vmem:[%s5 + $0x30] sm:$0xff]
  %v116 = vld [vmem:[%s5 + $0x38] sm:$0xff]
  %v117 = vld [vmem:[%s5 + $0x40] sm:$0xff]
  %v118 = vld [vmem:[%s5 + $0x48] sm:$0xff]
  %v119 = vld [vmem:[%s5 + $0x50] sm:$0xff]
  %v120 = vld [vmem:[%s5 + $0x58] sm:$0xff]
  %v121 = vld [vmem:[%s5 + $0x60] sm:$0xff]
  %v122 = vld [vmem:[%s5 + $0x68] sm:$0xff]
  %v123 = vld [vmem:[%s5 + $0x70] sm:$0xff]
  %v124 = vld [vmem:[%s5 + $0x78] sm:$0xff]
  %v125 = vld [vmem:[%s6] sm:$0x1]
  %v127 = vperm.slane %v125, 0
  %129 = vmatpush.msra.mxu0 %v124
  %130 = vmatpush.msra.mxu0 %v123
  %131 = vmatpush.msra.mxu0 %v122
  %132 = vmatpush.msra.mxu0 %v121
  %133 = vmatpush.msra.mxu0 %v120
  %134 = vmatpush.msra.mxu0 %v119
  %135 = vmatpush.msra.mxu0 %v118
  %136 = vmatpush.msra.mxu0 %v117
  %137 = vmatpush.msra.mxu0 %v116
  %138 = vmatpush.msra.mxu0 %v115
  %139 = vmatpush.msra.mxu0 %v114
  %140 = vmatpush.msra.mxu0 %v113
  %141 = vmatpush.msra.mxu0 %v112
  %142 = vmatpush.msra.mxu0 %v111
  %143 = vmatpush.msra.mxu0 %v110
  %144 = vmatpush.msra.mxu0 %v109
  %145 = vmatmul.f32.gmra.mxu0 %v108
  %v146 = vpop.f32.mrf.mxu0
  %v147 = vadd.f32 %v127, %v146
  %148 = vdwg.mxu0
  %149 = vst [vmem:[%s7] sm:$0xff] %v147
  // Predicated region
  $region30: #{dnn_forward.1} parent=0 // pred_check
    _
  $region31: #{dnn_forward.1} parent=0 // pred_check_branch
    %151 = sbr.rel (0) target = $region33
  $region32: #{dnn_forward.1} parent=0 // pred_region
    _
  $region33: #{dnn_forward.1} parent=0 // pred_fallthru
    _
  // Predicated region
  $region34: #{dnn_forward.1} parent=0 // pred_check
    _
  $region35: #{dnn_forward.1} parent=0 // pred_check_branch
    %153 = sbr.rel (0) target = $region37
  $region36: #{dnn_forward.1} parent=0 // pred_region
    _
  $region37: #{dnn_forward.1} parent=0 // pred_fallthru
    _

</llo_original>
